<compile_context>
chip_gen: v6e
topology: v6e:2x2x1
jax: 0.10.0
libtpu: 0.0.40
codegen_flags: <defaults>
</compile_context>

<pallas_src>
import functools

import jax
import jax.numpy as jnp
from jax.experimental import pallas as pl
from jax.experimental.pallas import tpu as pltpu

_ROW_TILE = 512     # sublane-dim tile cap (batch rows)
_COL_TILE = 2048    # lane-dim tile cap (negatives per row)


def _round_up(x, m):
    return (x + m - 1) // m * m


def _hard_mining_loss_kernel(pos_ref, neg_ref, rowsum_ref, *, margin, n_cols, mask_cols):
    # pos_ref:    (tb, 1)   positive similarities for this row tile
    # neg_ref:    (tb, tn)  negative-similarity tile
    # rowsum_ref: (tb, 1)   f32 per-row partial sums, resident across the j axis
    j = pl.program_id(1)

    @pl.when(j == 0)
    def _():
        rowsum_ref[...] = jnp.zeros_like(rowsum_ref)

    tb, tn = neg_ref.shape
    pos = pos_ref[...].astype(jnp.float32)            # (tb, 1)
    neg = neg_ref[...].astype(jnp.float32)            # (tb, tn)

    # hard_neg = relu(neg_sim - margin + pos_sim[:, None])
    h = jnp.maximum(neg + (pos - margin), 0.0)
    # log(1 + exp(h)) computed stably for h >= 0:  h + log(1 + exp(-h))
    sp = h + jnp.log(1.0 + jnp.exp(-h))

    if mask_cols:
        # Zero contributions from out-of-bounds (ragged last tile) columns.
        col = j * tn + jax.lax.broadcasted_iota(jnp.int32, (tb, tn), 1)
        sp = jnp.where(col < n_cols, sp, 0.0)
    # Rows beyond the true batch size need no mask: those rows of rowsum_ref fall
    # outside the (B, 1) output array and their writeback is discarded.

    rowsum_ref[...] += jnp.sum(sp, axis=1, keepdims=True)   # lane (XLU) reduction


@functools.partial(jax.jit, static_argnames=("margin",))
def hard_mining_loss(pos_sim, neg_sim, *, margin=0.3):
    """pos_sim: (B,), neg_sim: (B, N) -> scalar loss (matches HardMiningLoss.forward)."""
    B, N = neg_sim.shape
    assert pos_sim.shape == (B,), "pos_sim must have shape (batch,)"

    tb = min(_ROW_TILE, _round_up(B, 8))      # multiple of 8 (sublanes)
    tn = min(_COL_TILE, _round_up(N, 128))    # multiple of 128 (lanes)
    grid = (pl.cdiv(B, tb), pl.cdiv(N, tn))
    mask_cols = (grid[1] * tn) != N           # static: emit column mask only if ragged

    kernel = functools.partial(
        _hard_mining_loss_kernel, margin=float(margin), n_cols=N, mask_cols=mask_cols
    )

    row_sums = pl.pallas_call(
        kernel,
        out_shape=jax.ShapeDtypeStruct((B, 1), jnp.float32),
        grid_spec=pltpu.PrefetchScalarGridSpec(
            num_scalar_prefetch=0,
            grid=grid,
            in_specs=[
                pl.BlockSpec((tb, 1), lambda i, j: (i, 0)),    # pos rows (reused over j)
                pl.BlockSpec((tb, tn), lambda i, j: (i, j)),   # neg tile
            ],
            out_specs=pl.BlockSpec((tb, 1), lambda i, j: (i, 0)),  # per-row accumulator
        ),
        compiler_params=pltpu.CompilerParams(
            # Row axis is independent (each row tile owns its output block) -> parallel
            # for megacore sharding; the N axis reduces into that block -> arbitrary.
            dimension_semantics=("parallel", "arbitrary"),
        ),
        cost_estimate=pl.CostEstimate(
            flops=6 * B * N,
            transcendentals=2 * B * N,                    # exp + log per element
            bytes_accessed=neg_sim.size * neg_sim.dtype.itemsize
            + pos_sim.size * pos_sim.dtype.itemsize
            + B * 4,
        ),
    )(pos_sim.reshape(B, 1), neg_sim)

    # Tiny epilogue: collapse per-row sums into the mean over the TRUE B*N.
    return jnp.sum(row_sums) * (1.0 / (B * N))


def _reference(pos_sim, neg_sim, margin):
    hard_neg = jnp.maximum(neg_sim - margin + pos_sim[:, None], 0.0)
    return jnp.mean(jnp.log(1.0 + jnp.exp(hard_neg)))


if __name__ == "__main__":
    margin = 0.3
    key = jax.random.PRNGKey(0)
    k1, k2, k3, k4 = jax.random.split(key, 4)

    # Small, deliberately non-aligned shapes (ragged tile + column mask path).
    B, N = 6, 40
    pos = jax.random.uniform(k1, (B,), minval=-1.0, maxval=1.0, dtype=jnp.float32)
    neg = jax.random.uniform(k2, (B, N), minval=-1.0, maxval=1.0, dtype=jnp.float32)
    loss = jax.block_until_ready(hard_mining_loss(pos, neg, margin=margin))
    ref = _reference(pos, neg, margin)
    assert loss.shape == ()
    assert jnp.allclose(loss, ref, atol=1e-5, rtol=1e-5), (loss, ref)

    # Larger ragged shape: 2x2 tile grid, column masking, partial-row writeback,
    # accumulation across the reduction axis and across row-tile partials.
    B2, N2 = 520, 2500
    pos2 = jax.random.uniform(k3, (B2,), minval=-1.0, maxval=1.0, dtype=jnp.float32)
    neg2 = jax.random.uniform(k4, (B2, N2), minval=-1.0, maxval=1.0, dtype=jnp.float32)
    loss2 = jax.block_until_ready(hard_mining_loss(pos2, neg2, margin=margin))
    ref2 = _reference(pos2, neg2, margin)
    assert jnp.allclose(loss2, ref2, atol=1e-4, rtol=1e-4), (loss2, ref2)

    print("KERNEL_OK")
</pallas_src>

<mosaic_0001>
module attributes {stable_mosaic.version = 11 : i64} {
  func.func @_hard_mining_loss_kernel(%arg0: i32, %arg1: i32, %arg2: memref<8x1xf32, #tpu.memory_space<vmem>>, %arg3: memref<8x128xf32, #tpu.memory_space<vmem>>, %arg4: memref<8x1xf32, #tpu.memory_space<vmem>>) attributes {dimension_semantics = [#tpu.dimension_semantics<parallel>, #tpu.dimension_semantics<arbitrary>], iteration_bounds = array<i64: 1, 1>, scalar_prefetch = 0 : i64, scratch_operands = 0 : i64, tpu.core_type = #tpu.core_type<tc>, window_params = [{transform_indices = @transform_0, window_bounds = array<i64: 8, 1>}, {transform_indices = @transform_1, window_bounds = array<i64: 8, 128>}, {transform_indices = @transform_2, window_bounds = array<i64: 8, 1>}]} {
    %c0_i32 = arith.constant 0 : i32
    %0 = arith.cmpi eq, %arg1, %c0_i32 : i32
    %1 = arith.extui %0 : i1 to i32
    %c0_i32_0 = arith.constant 0 : i32
    %2 = arith.cmpi ne, %1, %c0_i32_0 : i32
    scf.if %2 {
      %cst_13 = arith.constant 0.000000e+00 : f32
      %31 = vector.broadcast %cst_13 : f32 to vector<8x1xf32>
      %c0_14 = arith.constant 0 : index
      %c0_15 = arith.constant 0 : index
      %32 = vector.load %arg4[%c0_14, %c0_15] : memref<8x1xf32, #tpu.memory_space<vmem>>, vector<8x1xf32>
      tpu.vector_store %arg4[%c0_14, %c0_15], %31 {strides = array<i32>} : memref<8x1xf32, #tpu.memory_space<vmem>>, vector<8x1xf32>,
    } else {
    }
    %c0 = arith.constant 0 : index
    %c0_1 = arith.constant 0 : index
    %3 = vector.load %arg2[%c0, %c0_1] : memref<8x1xf32, #tpu.memory_space<vmem>>, vector<8x1xf32>
    %c0_2 = arith.constant 0 : index
    %c0_3 = arith.constant 0 : index
    %4 = vector.load %arg3[%c0_2, %c0_3] : memref<8x128xf32, #tpu.memory_space<vmem>>, vector<8x128xf32>
    %cst = arith.constant 3.000000e-01 : f32
    %5 = vector.broadcast %cst : f32 to vector<8x1xf32>
    %6 = arith.subf %3, %5 : vector<8x1xf32>
    %7 = vector.broadcast %6 : vector<8x1xf32> to vector<8x128xf32>
    %8 = arith.addf %4, %7 : vector<8x128xf32>
    %cst_4 = arith.constant 0.000000e+00 : f32
    %9 = vector.broadcast %cst_4 : f32 to vector<8x128xf32>
    %10 = arith.maximumf %8, %9 : vector<8x128xf32>
    %cst_5 = arith.constant 0.000000e+00 : f32
    %11 = vector.broadcast %cst_5 : f32 to vector<8x128xf32>
    %12 = arith.subf %11, %10 : vector<8x128xf32>
    %13 = math.exp %12 : vector<8x128xf32>
    %cst_6 = arith.constant 1.000000e+00 : f32
    %14 = vector.broadcast %cst_6 : f32 to vector<8x128xf32>
    %15 = arith.addf %14, %13 : vector<8x128xf32>
    %16 = math.log %15 : vector<8x128xf32>
    %17 = arith.addf %10, %16 : vector<8x128xf32>
    %c128_i32 = arith.constant 128 : i32
    %18 = arith.muli %arg1, %c128_i32 : i32
    %19 = tpu.iota {dimensions = array<i32: 1>} : vector<8x128xi32>
    %20 = vector.broadcast %18 : i32 to vector<8x128xi32>
    %21 = arith.addi %20, %19 : vector<8x128xi32>
    %c40_i32 = arith.constant 40 : i32
    %22 = vector.broadcast %c40_i32 : i32 to vector<8x128xi32>
    %23 = arith.cmpi slt, %21, %22 : vector<8x128xi32>
    %cst_7 = arith.constant 0.000000e+00 : f32
    %24 = vector.broadcast %cst_7 : f32 to vector<8x128xf32>
    %25 = arith.select %23, %17, %24 : vector<8x128xi1>, vector<8x128xf32>
    %c0_8 = arith.constant 0 : index
    %c0_9 = arith.constant 0 : index
    %26 = vector.load %arg4[%c0_8, %c0_9] : memref<8x1xf32, #tpu.memory_space<vmem>>, vector<8x1xf32>
    %cst_10 = arith.constant dense<0.000000e+00> : vector<8xf32>
    %27 = vector.multi_reduction <add>, %25, %cst_10 [1] : vector<8x128xf32> to vector<8xf32>
    %28 = vector.shape_cast %27 : vector<8xf32> to vector<8x1xf32>
    %29 = arith.addf %26, %28 : vector<8x1xf32>
    %c0_11 = arith.constant 0 : index
    %c0_12 = arith.constant 0 : index
    %30 = vector.load %arg4[%c0_11, %c0_12] : memref<8x1xf32, #tpu.memory_space<vmem>>, vector<8x1xf32>
    tpu.vector_store %arg4[%c0_11, %c0_12], %29 {strides = array<i32>} : memref<8x1xf32, #tpu.memory_space<vmem>>, vector<8x1xf32>,
    return
  }
  func.func @transform_0(%arg0: i32, %arg1: i32) -> (i32, i32) {
    %c0_i32 = arith.constant 0 : i32
    %c0_i32_0 = arith.constant 0 : i32
    return %arg0, %c0_i32 : i32, i32
  }
  func.func @transform_1(%arg0: i32, %arg1: i32) -> (i32, i32) {
    %c0_i32 = arith.constant 0 : i32
    return %arg0, %arg1 : i32, i32
  }
  func.func @transform_2(%arg0: i32, %arg1: i32) -> (i32, i32) {
    %c0_i32 = arith.constant 0 : i32
    %c0_i32_0 = arith.constant 0 : i32
    return %arg0, %c0_i32 : i32, i32
  }
}

</mosaic_0001>

<llo_original>
// kernel: hard_mining_loss.1
$region0: #{hard_mining_loss.1}
  #allocation0 [shape = 'u32[]', space=smem, size = 0x4, offset = 0x4, fixed_abs, tag = 'smem constant byte address 0x4 - core index']
  #allocation1 [shape = 'u32[144,128]{1,0:T(1,128)}', space=vmem, size = 0x12000, scoped, tag = 'internal scratch']
  %s0 = inlined_call_operand.vmem [shape: f32[6,1], index: 0, kind: input, shape index: {}]
  %s1 = inlined_call_operand.vmem [shape: f32[6,40], index: 1, kind: input, shape index: {}]
  %s2 = inlined_call_operand.vmem [shape: f32[6,1], index: 2, kind: output, shape index: {}]
  %s3 = sld [smem:[#allocation0]]
  $region22: #{hard_mining_loss.1} parent=0
    _
  %s5 = ssub.s32 1, %s3
  %s6 = scalar_select 0, %s5, %s3
  // Predicated region
  $region2: #{hard_mining_loss.1} parent=0 // pred_check
    _
  $region3: #{hard_mining_loss.1} parent=0 // pred_check_branch
    %8 = sbr.rel (0) target = $region5
  $region4: #{hard_mining_loss.1} parent=0 // pred_region
    _
  $region5: #{hard_mining_loss.1} parent=0 // pred_fallthru
    _
  // Predicated region
  $region6: #{hard_mining_loss.1} parent=0 // pred_check
    _
  $region7: #{hard_mining_loss.1} parent=0 // pred_check_branch
    %10 = sbr.rel (0) target = $region9
  $region8: #{hard_mining_loss.1} parent=0 // pred_region
    _
  $region9: #{hard_mining_loss.1} parent=0 // pred_fallthru
    _
  %p11 = scmp.eq.s32.totalorder 0, 0
  // Predicated region
  $region10: #{hard_mining_loss.1} parent=0 // pred_check
    %p12 = pneg %p11
  $region11: #{hard_mining_loss.1} parent=0 // pred_check_branch
    %14 = sbr.rel (%p12) target = $region13
  $region12: #{hard_mining_loss.1} parent=0 // pred_region
    %vm15 = vcmask 7168
    %16 = vst.msk [vmem:[%s2] sm:$0xff] %vm15, 0.0
  $region13: #{hard_mining_loss.1} parent=0 // pred_fallthru
    _
  %v17 = vld [vmem:[%s0] sm:$0xff]
  %v18 = vld [vmem:[%s1] sm:$0xff]
  %v19 = vsub.f32 %v17, 0.3
  %21 = vset.pattern.permute.xlu0 0
  %22 = vperm.xlu0 %21, %v19
  %v23 = vpop.permute.xlu0 %22
  %v25 = vadd.f32 %v18, %v23
  %v26 = vmax.f32 %v25, 0.0
  %v27 = vsub.f32 0.0, %v26
  %v28 = vmul.f32 %v27, 1.442695
  %v29 = vpow.pop %v28
  %v30 = vadd.f32 %v29, 1.0
  %v31 = vlog2.pop %v30
  %v32 = vmul.f32 %v31, 0.6931472
  %v33 = vadd.f32 %v26, %v32
  %s34 = smul.u32 0, 128
  %v35 = vlaneseq
  %v36 = vand.u32 %v35, 127
  %v37 = vstv %s34
  %v38 = vadd.s32 %v37, %v36
  %vm39 = vcmp.lt.s32.totalorder %v38, 40
  %v40 = vsel %vm39, %v33, 0.0
  %v41 = vld [vmem:[%s2] sm:$0xff]
  %42 = vadd.xlane.f32.xlu0 %v40
  %v43 = vpop.xlane.xlu0 %42
  %v44 = vadd.f32 %v41, %v43
  %vm45 = vcmask 7168
  %46 = vst.msk [vmem:[%s2] sm:$0xff] %vm45, %v44
  // Predicated region
  $region14: #{hard_mining_loss.1} parent=0 // pred_check
    _
  $region15: #{hard_mining_loss.1} parent=0 // pred_check_branch
    %48 = sbr.rel (0) target = $region17
  $region16: #{hard_mining_loss.1} parent=0 // pred_region
    _
  $region17: #{hard_mining_loss.1} parent=0 // pred_fallthru
    _
  // Predicated region
  $region18: #{hard_mining_loss.1} parent=0 // pred_check
    _
  $region19: #{hard_mining_loss.1} parent=0 // pred_check_branch
    %50 = sbr.rel (0) target = $region21
  $region20: #{hard_mining_loss.1} parent=0 // pred_region
    _
  $region21: #{hard_mining_loss.1} parent=0 // pred_fallthru
    _

</llo_original>
